<compile_context>
chip_gen: v7x
topology: tpu7x:2x2x1
jax: 0.10.0
libtpu: 0.0.40
codegen_flags: <defaults>
</compile_context>

<pallas_src>
import numpy as np
import jax
import jax.numpy as jnp
from jax import lax
from jax.experimental import pallas as pl
from jax.experimental.pallas import tpu as pltpu


def features_linear_kernel(ids_ref, w_ref, bias_ref, out_ref):
    # ids_ref : VMEM (F, B_T)  int32   flat (offset-added, clamped) ids; batch on lanes
    # w_ref   : VMEM (Vp, D)   float32 resident embedding table (vocab on sublanes)
    # bias_ref: VMEM (D, 1)    float32 resident bias
    # out_ref : VMEM (D, B_T)  float32 transposed, lane-dense output tile
    F, B_T = ids_ref.shape
    Vp, D = w_ref.shape

    ids = ids_ref[...]                                        # (F, B_T) int32, loaded once
    vrow = lax.broadcasted_iota(jnp.int32, (Vp, 1), 0)        # (Vp, 1) vocab ids on sublanes

    # counts[v, b] = #{f : ids[f, b] == v}  — F vectorized compares, pure VPU work.
    counts = jnp.zeros((Vp, B_T), jnp.float32)
    for f in range(F):                                        # static, tiny trip count
        counts = counts + (ids[f:f + 1, :] == vrow).astype(jnp.float32)

    # out[d, b] = sum_v counts[v, b] * w[v, d] + bias[d]
    # Weighted sublane reduction per output channel: multiply (lane-broadcast of the (Vp,1)
    # table column) + cross-sublane sum.  D is tiny (1 here) -> static loop, no MXU.
    for d in range(D):
        w_col = w_ref[:, d:d + 1]                             # (Vp, 1)
        out_ref[d:d + 1, :] = (
            jnp.sum(counts * w_col, axis=0, keepdims=True) + bias_ref[d:d + 1, :]
        )


def _ceil_to(x, m):
    return -(-x // m) * m


def features_linear(x, offsets, weight, bias, *, block_b=512):
    """x: (B, F) int, offsets: (F,) int, weight: (V, D) f32, bias: (D,) f32 -> (B, D) f32."""
    B, F = x.shape
    V, D = weight.shape
    assert block_b % 128 == 0, "keep the output tile lane-dense"

    # Hoisted, vectorized flat-index computation + OOB clamp (one XLA op, not per-element).
    flat = jnp.clip(x.astype(jnp.int32) + offsets.astype(jnp.int32)[None, :], 0, V - 1)

    # Tile sizing: large tiles amortize per-step pipeline overhead, but keep >= 2 grid steps
    # when the batch allows so ("parallel",) can shard tiles across both v7x TensorCores.
    block_b = max(128, min(block_b, _ceil_to((B + 1) // 2, 128)))
    b_pad = _ceil_to(B, block_b)

    # Indices transposed to (F, b_pad): batch on lanes. Padded lanes point at row 0 and are
    # discarded by the final [:B] slice.
    ids_t = jnp.zeros((F, b_pad), jnp.int32).at[:, :B].set(flat.T)

    # Pad vocab to a multiple of 8 (sublane alignment); padded rows are zero and never hit
    # (ids are clamped to < V).
    v_pad = _ceil_to(V, 8)
    w_p = jnp.zeros((v_pad, D), jnp.float32).at[:V].set(weight.astype(jnp.float32))
    bias_2d = bias.reshape(D, 1).astype(jnp.float32)

    out_t = pl.pallas_call(
        features_linear_kernel,
        out_shape=jax.ShapeDtypeStruct((D, b_pad), jnp.float32),
        grid_spec=pltpu.PrefetchScalarGridSpec(
            num_scalar_prefetch=0,
            grid=(b_pad // block_b,),
            in_specs=[
                # Per-tile index block: pipelined VMEM input, batch on lanes.
                pl.BlockSpec((F, block_b), lambda i: (0, i)),
                # Embedding table: constant index_map -> DMA'd once, stays resident.
                pl.BlockSpec((v_pad, D), lambda i: (0, 0)),
                # Bias: tiny, resident.
                pl.BlockSpec((D, 1), lambda i: (0, 0)),
            ],
            out_specs=pl.BlockSpec((D, block_b), lambda i: (0, i)),
        ),
        compiler_params=pltpu.CompilerParams(
            dimension_semantics=("parallel",),      # megacore sharding on v7x
            vmem_limit_bytes=32 * 1024 * 1024,      # safe on v5e/v6e/v7x
        ),
    )(ids_t, w_p, bias_2d)

    return out_t.T[:B]                              # layout plumbing only: (D, b_pad) -> (B, D)


if __name__ == "__main__":
    # Module config consistent with FeaturesLinear(field_dims, output_dim=1).
    field_dims = (11, 21, 17, 15)                   # vocab = 64
    output_dim = 1
    batch = 200                                     # pads to 256 -> grid of 2 batch tiles
    num_fields = len(field_dims)
    vocab = int(sum(field_dims))

    key = jax.random.PRNGKey(0)
    k_w, k_x = jax.random.split(key)

    # Deterministic parameter init (torch.nn.Embedding default ~ N(0,1); bias = zeros).
    weight = jax.random.normal(k_w, (vocab, output_dim), dtype=jnp.float32)
    bias = jnp.zeros((output_dim,), dtype=jnp.float32)
    offsets = jnp.asarray(np.array((0, *np.cumsum(field_dims)[:-1]), dtype=np.int32))

    # Per-field indices, each within its own field's cardinality.
    cols = []
    keys = jax.random.split(k_x, num_fields)
    for f, dim in enumerate(field_dims):
        cols.append(jax.random.randint(keys[f], (batch, 1), 0, dim, dtype=jnp.int32))
    x = jnp.concatenate(cols, axis=1)               # (batch, num_fields) int32

    out = features_linear(x, offsets, weight, bias)
    out = jax.block_until_ready(out)

    # Pure-JAX reference of the PyTorch forward.
    flat = (x + offsets[None, :]).astype(jnp.int32)                # (B, F)
    ref = jnp.take(weight, flat, axis=0).sum(axis=1) + bias[None]  # (B, D)
    np.testing.assert_allclose(np.asarray(out), np.asarray(ref), rtol=1e-5, atol=1e-5)

    assert out.shape == (batch, output_dim)
    print("KERNEL_OK")
</pallas_src>

<mosaic_0001>
module attributes {stable_mosaic.version = 11 : i64} {
  func.func @features_linear_kernel(%arg0: i32, %arg1: memref<4x128xi32, #tpu.memory_space<vmem>>, %arg2: memref<64x1xf32, #tpu.memory_space<vmem>>, %arg3: memref<1x1xf32, #tpu.memory_space<vmem>>, %arg4: memref<1x128xf32, #tpu.memory_space<vmem>>) attributes {dimension_semantics = [#tpu.dimension_semantics<parallel>], iteration_bounds = array<i64: 2>, scalar_prefetch = 0 : i64, scratch_operands = 0 : i64, tpu.core_type = #tpu.core_type<tc>, window_params = [{transform_indices = @transform_0, window_bounds = array<i64: 4, 128>}, {pipeline_mode = #tpu.pipeline_mode<synchronous>, transform_indices = @transform_1, window_bounds = array<i64: 64, 1>}, {pipeline_mode = #tpu.pipeline_mode<synchronous>, transform_indices = @transform_2, window_bounds = array<i64: 1, 1>}, {transform_indices = @transform_3, window_bounds = array<i64: 1, 128>}]} {
    %c0 = arith.constant 0 : index
    %c0_0 = arith.constant 0 : index
    %0 = vector.load %arg1[%c0, %c0_0] : memref<4x128xi32, #tpu.memory_space<vmem>>, vector<4x128xi32>
    %1 = tpu.iota {dimensions = array<i32: 0>} : vector<64x1xi32>
    %cst = arith.constant 0.000000e+00 : f32
    %2 = vector.broadcast %cst : f32 to vector<64x128xf32>
    %3 = vector.extract_strided_slice %0 {offsets = [0, 0], sizes = [1, 128], strides = [1, 1]} : vector<4x128xi32> to vector<1x128xi32>
    %4 = vector.broadcast %3 : vector<1x128xi32> to vector<64x128xi32>
    %5 = vector.broadcast %1 : vector<64x1xi32> to vector<64x128xi32>
    %6 = arith.cmpi eq, %4, %5 : vector<64x128xi32>
    %7 = arith.extui %6 : vector<64x128xi1> to vector<64x128xi32>
    %8 = arith.sitofp %7 : vector<64x128xi32> to vector<64x128xf32>
    %9 = arith.addf %2, %8 : vector<64x128xf32>
    %10 = vector.extract_strided_slice %0 {offsets = [1, 0], sizes = [1, 128], strides = [1, 1]} : vector<4x128xi32> to vector<1x128xi32>
    %11 = vector.broadcast %10 : vector<1x128xi32> to vector<64x128xi32>
    %12 = vector.broadcast %1 : vector<64x1xi32> to vector<64x128xi32>
    %13 = arith.cmpi eq, %11, %12 : vector<64x128xi32>
    %14 = arith.extui %13 : vector<64x128xi1> to vector<64x128xi32>
    %15 = arith.sitofp %14 : vector<64x128xi32> to vector<64x128xf32>
    %16 = arith.addf %9, %15 : vector<64x128xf32>
    %17 = vector.extract_strided_slice %0 {offsets = [2, 0], sizes = [1, 128], strides = [1, 1]} : vector<4x128xi32> to vector<1x128xi32>
    %18 = vector.broadcast %17 : vector<1x128xi32> to vector<64x128xi32>
    %19 = vector.broadcast %1 : vector<64x1xi32> to vector<64x128xi32>
    %20 = arith.cmpi eq, %18, %19 : vector<64x128xi32>
    %21 = arith.extui %20 : vector<64x128xi1> to vector<64x128xi32>
    %22 = arith.sitofp %21 : vector<64x128xi32> to vector<64x128xf32>
    %23 = arith.addf %16, %22 : vector<64x128xf32>
    %24 = vector.extract_strided_slice %0 {offsets = [3, 0], sizes = [1, 128], strides = [1, 1]} : vector<4x128xi32> to vector<1x128xi32>
    %25 = vector.broadcast %24 : vector<1x128xi32> to vector<64x128xi32>
    %26 = vector.broadcast %1 : vector<64x1xi32> to vector<64x128xi32>
    %27 = arith.cmpi eq, %25, %26 : vector<64x128xi32>
    %28 = arith.extui %27 : vector<64x128xi1> to vector<64x128xi32>
    %29 = arith.sitofp %28 : vector<64x128xi32> to vector<64x128xf32>
    %30 = arith.addf %23, %29 : vector<64x128xf32>
    %c0_1 = arith.constant 0 : index
    %c0_2 = arith.constant 0 : index
    %31 = vector.load %arg2[%c0_1, %c0_2] : memref<64x1xf32, #tpu.memory_space<vmem>>, vector<64x1xf32>
    %32 = vector.broadcast %31 : vector<64x1xf32> to vector<64x128xf32>
    %33 = arith.mulf %30, %32 : vector<64x128xf32>
    %cst_3 = arith.constant dense<0.000000e+00> : vector<128xf32>
    %34 = vector.multi_reduction <add>, %33, %cst_3 [0] : vector<64x128xf32> to vector<128xf32>
    %35 = vector.shape_cast %34 : vector<128xf32> to vector<1x128xf32>
    %c0_4 = arith.constant 0 : index
    %c0_5 = arith.constant 0 : index
    %36 = vector.load %arg3[%c0_4, %c0_5] : memref<1x1xf32, #tpu.memory_space<vmem>>, vector<1x1xf32>
    %37 = vector.broadcast %36 : vector<1x1xf32> to vector<1x128xf32>
    %38 = arith.addf %35, %37 : vector<1x128xf32>
    %c0_6 = arith.constant 0 : index
    %c0_7 = arith.constant 0 : index
    %39 = vector.load %arg4[%c0_6, %c0_7] : memref<1x128xf32, #tpu.memory_space<vmem>>, vector<1x128xf32>
    tpu.vector_store %arg4[%c0_6, %c0_7], %38 {strides = array<i32>} : memref<1x128xf32, #tpu.memory_space<vmem>>, vector<1x128xf32>,
    return
  }
  func.func @transform_0(%arg0: i32) -> (i32, i32) {
    %c0_i32 = arith.constant 0 : i32
    %c0_i32_0 = arith.constant 0 : i32
    return %c0_i32, %arg0 : i32, i32
  }
  func.func @transform_1(%arg0: i32) -> (i32, i32) {
    %c0_i32 = arith.constant 0 : i32
    %c0_i32_0 = arith.constant 0 : i32
    %c0_i32_1 = arith.constant 0 : i32
    return %c0_i32, %c0_i32_0 : i32, i32
  }
  func.func @transform_2(%arg0: i32) -> (i32, i32) {
    %c0_i32 = arith.constant 0 : i32
    %c0_i32_0 = arith.constant 0 : i32
    %c0_i32_1 = arith.constant 0 : i32
    return %c0_i32, %c0_i32_0 : i32, i32
  }
  func.func @transform_3(%arg0: i32) -> (i32, i32) {
    %c0_i32 = arith.constant 0 : i32
    %c0_i32_0 = arith.constant 0 : i32
    return %c0_i32, %arg0 : i32, i32
  }
}

</mosaic_0001>

<llo_original>
// kernel: tpu_custom_call.1
$region0: #{tpu_custom_call.1}
  #allocation0 [shape = 'u32[]', space=smem, size = 0x4, offset = 0x4, fixed_abs, tag = 'smem constant byte address 0x4 - core index']
  #allocation1 [shape = 'u32[144,128]{1,0:T(1,128)}', space=vmem, size = 0x12000, scoped, tag = 'internal scratch']
  #allocation2 [shape = 'f32[1,1]{1,0:T(1,128)S(1)}', space=vmem, size = 0x200, scoped, tag = 'scoped memory for tpu_custom_call.1']
  %s0 = inlined_call_operand.vmem [shape: s32[4,256], index: 0, kind: input, shape index: {}]
  %s1 = inlined_call_operand.vmem [shape: f32[64,1], index: 1, kind: input, shape index: {}]
  %s2 = inlined_call_operand.<no memory space> [shape: f32[1,1], index: 2, kind: input, shape index: {}]
  %s3 = inlined_call_operand.hbm [shape: f32[1,256], index: 3, kind: output, shape index: {}]
  %s4 = sld [smem:[#allocation0]]
  $region45: #{tpu_custom_call.1} parent=0
    _
  %s6 = ssub.s32 1, %s4
  %s7 = scalar_select 0, %s6, %s4
  %v8 = vstv %s2
  %9 = vst [vmem:[#allocation2] sm:$0x1] %v8
  $region1: #{tpu_custom_call.1} parent=0
    #allocation3 [shape = 'u8[1024]{0}', space=vmem, size = 0x400, scoped, tag = 'output window, operand 0']
    #allocation4 [shape = 's32[2]{0}', space=sflag, size = 0x8, scoped, tag = 'scoped memory for tpu_custom_call.1']
    %10 = vsyncpa [#allocation4], 0
    %s11 = scalar_lea.sflag [#allocation4], 1
    %12 = vsyncpa %s11, 0
    loop: start=0, step=1, limit=4
    $region2: #{tpu_custom_call.1} parent=1 // loop_pre_header
      _
    $region3: #{tpu_custom_call.1} parent=1 // loop_header
      %s14 = sphi 0, %s18
      %p15 = scmp.ge.s32.totalorder %s14, 4
      %s24 = sphi 0, %s26
      %s27 = sphi 0, %s24
      %s28 = sphi 0, %s27
      %s44 = sphi 0, %s28
      %s48 = sphi 0, %s48
      %s50 = sphi 0, %s48
      %s51 = sphi 0, %s50
      %s65 = sphi 0, %s51
      %s69 = sphi 0, %s69
      %s71 = sphi 0, %s69
      %s72 = sphi 0, %s71
      %s86 = sphi 0, %s72
      %s92 = sphi 0, %s94
      %s95 = sphi 0, %s92
      %s96 = sphi 0, %s95
      %s112 = sphi 0, %s96
    $region4: #{tpu_custom_call.1} parent=1 // loop_header_branch
      %17 = sbr.rel (%p15) target = $region8
    $region5: #{tpu_custom_call.1} parent=1 // loop_body
      %s19 = ssub.s32 %s14, 1
      %s20 = ssub.s32 %s14, 2
      %s21 = sadd.s32 %s14, 1
      %s22 = ssub.s32 %s14, %s21
      %p23 = scmp.eq.s32.totalorder %s22, 0
      %s25 = sadd.s32 %s24, 1
      %s26 = scalar_select %p23, %s24, %s25
      %p29 = pneg %p23
      %p30 = scmp.eq.s32.totalorder %s14, 1
      %p31 = por %p29, %p30
      %p32 = scmp.ne.s32.totalorder %s24, %s27
      %p33 = scmp.eq.s32.totalorder %s14, 0
      %p34 = por %p32, %p33
      %p35 = scmp.ne.s32.totalorder %s24, %s27
      %p36 = scmp.eq.s32.totalorder %s19, 1
      %p37 = por %p35, %p36
      %p38 = scmp.ne.s32.totalorder %s27, %s28
      %p39 = scmp.eq.s32.totalorder %s19, 0
      %p40 = por %p38, %p39
      %p41 = scmp.ne.s32.totalorder %s27, %s28
      %p42 = scmp.eq.s32.totalorder %s20, 1
      %p43 = por %p41, %p42
      %p45 = scmp.ne.s32.totalorder %s28, %s44
      %p46 = scmp.eq.s32.totalorder %s20, 0
      %p47 = por %p45, %p46
      %s49 = sadd.s32 %s48, 1
      %p52 = scmp.eq.s32.totalorder %s14, 1
      %p53 = scmp.ne.s32.totalorder %s48, %s50
      %p54 = scmp.eq.s32.totalorder %s14, 0
      %p55 = por %p53, %p54
      %p56 = scmp.ne.s32.totalorder %s48, %s50
      %p57 = scmp.eq.s32.totalorder %s19, 1
      %p58 = por %p56, %p57
      %p59 = scmp.ne.s32.totalorder %s50, %s51
      %p60 = scmp.eq.s32.totalorder %s19, 0
      %p61 = por %p59, %p60
      %p62 = scmp.ne.s32.totalorder %s50, %s51
      %p63 = scmp.eq.s32.totalorder %s20, 1
      %p64 = por %p62, %p63
      %p66 = scmp.ne.s32.totalorder %s51, %s65
      %p67 = scmp.eq.s32.totalorder %s20, 0
      %p68 = por %p66, %p67
      %s70 = sadd.s32 %s69, 1
      %p73 = scmp.eq.s32.totalorder %s14, 1
      %p74 = scmp.ne.s32.totalorder %s69, %s71
      %p75 = scmp.eq.s32.totalorder %s14, 0
      %p76 = por %p74, %p75
      %p77 = scmp.ne.s32.totalorder %s69, %s71
      %p78 = scmp.eq.s32.totalorder %s19, 1
      %p79 = por %p77, %p78
      %p80 = scmp.ne.s32.totalorder %s71, %s72
      %p81 = scmp.eq.s32.totalorder %s19, 0
      %p82 = por %p80, %p81
      %p83 = scmp.ne.s32.totalorder %s71, %s72
      %p84 = scmp.eq.s32.totalorder %s20, 1
      %p85 = por %p83, %p84
      %p87 = scmp.ne.s32.totalorder %s72, %s86
      %p88 = scmp.eq.s32.totalorder %s20, 0
      %p89 = por %p87, %p88
      %s90 = ssub.s32 %s14, %s21
      %p91 = scmp.eq.s32.totalorder %s90, 0
      %s93 = sadd.s32 %s92, 1
      %s94 = scalar_select %p91, %s92, %s93
      %p97 = pneg %p91
      %p98 = scmp.eq.s32.totalorder %s14, 1
      %p99 = por %p97, %p98
      %p100 = scmp.ne.s32.totalorder %s92, %s95
      %p101 = scmp.eq.s32.totalorder %s14, 0
      %p102 = por %p100, %p101
      %p103 = scmp.ne.s32.totalorder %s92, %s95
      %p104 = scmp.eq.s32.totalorder %s19, 1
      %p105 = por %p103, %p104
      %p106 = scmp.ne.s32.totalorder %s95, %s96
      %p107 = scmp.eq.s32.totalorder %s19, 0
      %p108 = por %p106, %p107
      %p109 = scmp.ne.s32.totalorder %s95, %s96
      %p110 = scmp.eq.s32.totalorder %s20, 1
      %p111 = por %p109, %p110
      %p113 = scmp.ne.s32.totalorder %s96, %s112
      %p114 = scmp.eq.s32.totalorder %s20, 0
      %p115 = por %p113, %p114
      %p116 = scmp.le.s32.totalorder 1, %s14
      %p117 = scmp.lt.s32.totalorder %s14, 3
      %p118 = pnand %p116, %p117
      %p119 = pneg %p118
      // Predicated region
      $region9: #{tpu_custom_call.1} parent=5 // pred_check
        _
      $region10: #{tpu_custom_call.1} parent=5 // pred_check_branch
        %121 = sbr.rel (%p118) target = $region12
      $region11: #{tpu_custom_call.1} parent=5 // pred_region
        %s122 = ssub.s32 %s14, 1
        // Predicated region
        $region13: #{tpu_custom_call.1} parent=11 // pred_check
          %p123 = pneg %p61
        $region14: #{tpu_custom_call.1} parent=11 // pred_check_branch
          %125 = sbr.rel (%p123) target = $region16
        $region15: #{tpu_custom_call.1} parent=11 // pred_region
          _
        $region16: #{tpu_custom_call.1} parent=11 // pred_fallthru
          _
        // Predicated region
        $region17: #{tpu_custom_call.1} parent=11 // pred_check
          %p126 = pneg %p82
        $region18: #{tpu_custom_call.1} parent=11 // pred_check_branch
          %128 = sbr.rel (%p126) target = $region20
        $region19: #{tpu_custom_call.1} parent=11 // pred_region
          _
        $region20: #{tpu_custom_call.1} parent=11 // pred_fallthru
          _
      $region12: #{tpu_custom_call.1} parent=5 // pred_fallthru
        _
      %p129 = scmp.lt.s32.totalorder %s14, 2
      // Predicated region
      $region21: #{tpu_custom_call.1} parent=5 // pred_check
        %p130 = pneg %p129
      $region22: #{tpu_custom_call.1} parent=5 // pred_check_branch
        %132 = sbr.rel (%p130) target = $region24
      $region23: #{tpu_custom_call.1} parent=5 // pred_region
        // Predicated region
        $region25: #{tpu_custom_call.1} parent=23 // pred_check
          %p133 = pneg %p34
        $region26: #{tpu_custom_call.1} parent=23 // pred_check_branch
          %135 = sbr.rel (%p133) target = $region28
        $region27: #{tpu_custom_call.1} parent=23 // pred_region
          %p136 = scmp.lt.s32.totalorder %s14, 1
          %s137 = scalar_select %p136, %s14, 1
          %s138 = smul.addr %s137, 4
          %s139 = scalar_lea.vmem %s0, %s138
        $region28: #{tpu_custom_call.1} parent=23 // pred_fallthru
          _
      $region24: #{tpu_custom_call.1} parent=5 // pred_fallthru
        _
      %p140 = scmp.le.s32.totalorder 1, %s14
      %p141 = scmp.lt.s32.totalorder %s14, 3
      %p142 = pnand %p140, %p141
      %p143 = pneg %p142
      // Predicated region
      $region29: #{tpu_custom_call.1} parent=5 // pred_check
        _
      $region30: #{tpu_custom_call.1} parent=5 // pred_check_branch
        %145 = sbr.rel (%p142) target = $region32
      $region31: #{tpu_custom_call.1} parent=5 // pred_region
        %s146 = ssub.s32 %s14, 1
        %p147 = scmp.lt.s32.totalorder %s19, 1
        %s148 = scalar_select %p147, %s19, 1
        %s149 = smul.addr %s148, 4
        %s150 = scalar_lea.vmem %s0, %s149
        %p151 = pneg %p40
        %p152 = pneg %p37
        %p153 = pneg %p61
        %p154 = pneg %p58
        %p155 = pneg %p82
        %p156 = pneg %p79
        %p157 = pneg %p108
        %p158 = pneg %p105
        %s159 = sand.u32 %s95, 1
        %s160 = scalar_lea.sflag [#allocation4], %s159
        %s161 = sand.u32 %s95, 1
        %s162 = scalar_lea.vmem [#allocation3], %s161
        %p163 = scmp.lt.s32.totalorder %s19, 1
        %s164 = scalar_select %p163, %s19, 1
        %s165 = smul.addr %s164, 4
        %s166 = scalar_lea.vmem %s0, %s165
        %v167 = vld [vmem:[%s166] sm:$0xf]
        %v168 = vlaneseq
        %v169 = vshrl.u32 %v168, 7
        %v170 = vadd.s32 %v169, 8
        %v171 = vadd.s32 %v169, 16
        %v172 = vadd.s32 %v169, 24
        %v173 = vadd.s32 %v169, 32
        %v174 = vadd.s32 %v169, 40
        %v175 = vadd.s32 %v169, 48
        %v176 = vadd.s32 %v169, 56
        %v177 = vlaneseq
        %v178 = vshrl.u32 %v177, 7
        %v179 = vsub.s32 0, %v178
        %v180 = vrot.slane %v167, %v179
        %vm181 = vcmp.eq.s32.totalorder %v180, %v169
        %vm182 = vcmp.eq.s32.totalorder %v180, %v170
        %vm183 = vcmp.eq.s32.totalorder %v180, %v171
        %vm184 = vcmp.eq.s32.totalorder %v180, %v172
        %vm185 = vcmp.eq.s32.totalorder %v180, %v173
        %vm186 = vcmp.eq.s32.totalorder %v180, %v174
        %vm187 = vcmp.eq.s32.totalorder %v180, %v175
        %vm188 = vcmp.eq.s32.totalorder %v180, %v176
        %v189 = vsel %vm181, 1, 0
        %v190 = vsel %vm182, 1, 0
        %v191 = vsel %vm183, 1, 0
        %v192 = vsel %vm184, 1, 0
        %v193 = vsel %vm185, 1, 0
        %v194 = vsel %vm186, 1, 0
        %v195 = vsel %vm187, 1, 0
        %v196 = vsel %vm188, 1, 0
        %v197 = vcvt.s32.f32 %v189
        %v198 = vcvt.s32.f32 %v190
        %v199 = vcvt.s32.f32 %v191
        %v200 = vcvt.s32.f32 %v192
        %v201 = vcvt.s32.f32 %v193
        %v202 = vcvt.s32.f32 %v194
        %v203 = vcvt.s32.f32 %v195
        %v204 = vcvt.s32.f32 %v196
        %v205 = vadd.f32 %v197, 0.0
        %v206 = vadd.f32 %v198, 0.0
        %v207 = vadd.f32 %v199, 0.0
        %v208 = vadd.f32 %v200, 0.0
        %v209 = vadd.f32 %v201, 0.0
        %v210 = vadd.f32 %v202, 0.0
        %v211 = vadd.f32 %v203, 0.0
        %v212 = vadd.f32 %v204, 0.0
        %v213 = vlaneseq
        %v214 = vshrl.u32 %v213, 7
        %v215 = vsub.s32 1, %v214
        %v216 = vrot.slane %v167, %v215
        %vm217 = vcmp.eq.s32.totalorder %v216, %v169
        %vm218 = vcmp.eq.s32.totalorder %v216, %v170
        %vm219 = vcmp.eq.s32.totalorder %v216, %v171
        %vm220 = vcmp.eq.s32.totalorder %v216, %v172
        %vm221 = vcmp.eq.s32.totalorder %v216, %v173
        %vm222 = vcmp.eq.s32.totalorder %v216, %v174
        %vm223 = vcmp.eq.s32.totalorder %v216, %v175
        %vm224 = vcmp.eq.s32.totalorder %v216, %v176
        %v225 = vsel %vm217, 1, 0
        %v226 = vsel %vm218, 1, 0
        %v227 = vsel %vm219, 1, 0
        %v228 = vsel %vm220, 1, 0
        %v229 = vsel %vm221, 1, 0
        %v230 = vsel %vm222, 1, 0
        %v231 = vsel %vm223, 1, 0
        %v232 = vsel %vm224, 1, 0
        %v233 = vcvt.s32.f32 %v225
        %v234 = vcvt.s32.f32 %v226
        %v235 = vcvt.s32.f32 %v227
        %v236 = vcvt.s32.f32 %v228
        %v237 = vcvt.s32.f32 %v229
        %v238 = vcvt.s32.f32 %v230
        %v239 = vcvt.s32.f32 %v231
        %v240 = vcvt.s32.f32 %v232
        %v241 = vadd.f32 %v205, %v233
        %v242 = vadd.f32 %v206, %v234
        %v243 = vadd.f32 %v207, %v235
        %v244 = vadd.f32 %v208, %v236
        %v245 = vadd.f32 %v209, %v237
        %v246 = vadd.f32 %v210, %v238
        %v247 = vadd.f32 %v211, %v239
        %v248 = vadd.f32 %v212, %v240
        %v249 = vlaneseq
        %v250 = vshrl.u32 %v249, 7
        %v251 = vsub.s32 2, %v250
        %v252 = vrot.slane %v167, %v251
        %vm253 = vcmp.eq.s32.totalorder %v252, %v169
        %vm254 = vcmp.eq.s32.totalorder %v252, %v170
        %vm255 = vcmp.eq.s32.totalorder %v252, %v171
        %vm256 = vcmp.eq.s32.totalorder %v252, %v172
        %vm257 = vcmp.eq.s32.totalorder %v252, %v173
        %vm258 = vcmp.eq.s32.totalorder %v252, %v174
        %vm259 = vcmp.eq.s32.totalorder %v252, %v175
        %vm260 = vcmp.eq.s32.totalorder %v252, %v176
        %v261 = vsel %vm253, 1, 0
        %v262 = vsel %vm254, 1, 0
        %v263 = vsel %vm255, 1, 0
        %v264 = vsel %vm256, 1, 0
        %v265 = vsel %vm257, 1, 0
        %v266 = vsel %vm258, 1, 0
        %v267 = vsel %vm259, 1, 0
        %v268 = vsel %vm260, 1, 0
        %v269 = vcvt.s32.f32 %v261
        %v270 = vcvt.s32.f32 %v262
        %v271 = vcvt.s32.f32 %v263
        %v272 = vcvt.s32.f32 %v264
        %v273 = vcvt.s32.f32 %v265
        %v274 = vcvt.s32.f32 %v266
        %v275 = vcvt.s32.f32 %v267
        %v276 = vcvt.s32.f32 %v268
        %v277 = vadd.f32 %v241, %v269
        %v278 = vadd.f32 %v242, %v270
        %v279 = vadd.f32 %v243, %v271
        %v280 = vadd.f32 %v244, %v272
        %v281 = vadd.f32 %v245, %v273
        %v282 = vadd.f32 %v246, %v274
        %v283 = vadd.f32 %v247, %v275
        %v284 = vadd.f32 %v248, %v276
        %v285 = vlaneseq
        %v286 = vshrl.u32 %v285, 7
        %v287 = vsub.s32 3, %v286
        %v288 = vrot.slane %v167, %v287
        %vm289 = vcmp.eq.s32.totalorder %v288, %v169
        %vm290 = vcmp.eq.s32.totalorder %v288, %v170
        %vm291 = vcmp.eq.s32.totalorder %v288, %v171
        %vm292 = vcmp.eq.s32.totalorder %v288, %v172
        %vm293 = vcmp.eq.s32.totalorder %v288, %v173
        %vm294 = vcmp.eq.s32.totalorder %v288, %v174
        %vm295 = vcmp.eq.s32.totalorder %v288, %v175
        %vm296 = vcmp.eq.s32.totalorder %v288, %v176
        %v297 = vsel %vm289, 1, 0
        %v298 = vsel %vm290, 1, 0
        %v299 = vsel %vm291, 1, 0
        %v300 = vsel %vm292, 1, 0
        %v301 = vsel %vm293, 1, 0
        %v302 = vsel %vm294, 1, 0
        %v303 = vsel %vm295, 1, 0
        %v304 = vsel %vm296, 1, 0
        %v305 = vcvt.s32.f32 %v297
        %v306 = vcvt.s32.f32 %v298
        %v307 = vcvt.s32.f32 %v299
        %v308 = vcvt.s32.f32 %v300
        %v309 = vcvt.s32.f32 %v301
        %v310 = vcvt.s32.f32 %v302
        %v311 = vcvt.s32.f32 %v303
        %v312 = vcvt.s32.f32 %v304
        %v313 = vadd.f32 %v277, %v305
        %v314 = vadd.f32 %v278, %v306
        %v315 = vadd.f32 %v279, %v307
        %v316 = vadd.f32 %v280, %v308
        %v317 = vadd.f32 %v281, %v309
        %v318 = vadd.f32 %v282, %v310
        %v319 = vadd.f32 %v283, %v311
        %v320 = vadd.f32 %v284, %v312
        %v321 = vld [vmem:[%s1] sm:$0xff]
        %v322 = vld [vmem:[%s1 + $0x8] sm:$0xff]
        %v323 = vld [vmem:[%s1 + $0x10] sm:$0xff]
        %v324 = vld [vmem:[%s1 + $0x18] sm:$0xff]
        %v325 = vld [vmem:[%s1 + $0x20] sm:$0xff]
        %v326 = vld [vmem:[%s1 + $0x28] sm:$0xff]
        %v327 = vld [vmem:[%s1 + $0x30] sm:$0xff]
        %v328 = vld [vmem:[%s1 + $0x38] sm:$0xff]
        %330 = vset.pattern.permute.xlu0 0
        %331 = vperm.xlu0 %330, %v321
        %v332 = vpop.permute.xlu0 %331
        %335 = vset.pattern.permute.xlu0 0
        %336 = vperm.xlu0 %335, %v322
        %v337 = vpop.permute.xlu0 %336
        %340 = vset.pattern.permute.xlu0 0
        %341 = vperm.xlu0 %340, %v323
        %v342 = vpop.permute.xlu0 %341
        %345 = vset.pattern.permute.xlu0 0
        %346 = vperm.xlu0 %345, %v324
        %v347 = vpop.permute.xlu0 %346
        %350 = vset.pattern.permute.xlu0 0
        %351 = vperm.xlu0 %350, %v325
        %v352 = vpop.permute.xlu0 %351
        %355 = vset.pattern.permute.xlu0 0
        %356 = vperm.xlu0 %355, %v326
        %v357 = vpop.permute.xlu0 %356
        %360 = vset.pattern.permute.xlu0 0
        %361 = vperm.xlu0 %360, %v327
        %v362 = vpop.permute.xlu0 %361
        %365 = vset.pattern.permute.xlu0 0
        %366 = vperm.xlu0 %365, %v328
        %v367 = vpop.permute.xlu0 %366
        %v369 = vmul.f32 %v313, %v332
        %v370 = vmul.f32 %v314, %v337
        %v371 = vmul.f32 %v315, %v342
        %v372 = vmul.f32 %v316, %v347
        %v373 = vmul.f32 %v317, %v352
        %v374 = vmul.f32 %v318, %v357
        %v375 = vmul.f32 %v319, %v362
        %v376 = vmul.f32 %v320, %v367
        %v377 = vadd.f32 %v369, %v370
        %v378 = vadd.f32 %v377, %v371
        %v379 = vadd.f32 %v378, %v372
        %v380 = vadd.f32 %v379, %v373
        %v381 = vadd.f32 %v380, %v374
        %v382 = vadd.f32 %v381, %v375
        %v383 = vadd.f32 %v382, %v376
        %v384 = vrot.slane %v383, 4
        %v385 = vadd.f32 %v383, %v384
        %v386 = vrot.slane %v385, 2
        %v387 = vadd.f32 %v385, %v386
        %v388 = vrot.slane %v387, 1
        %v389 = vadd.f32 %v387, %v388
        %v390 = vld [vmem:[#allocation2] sm:$0x1]
        %392 = vset.pattern.permute.xlu0 0
        %393 = vperm.xlu0 %392, %v390
        %v394 = vpop.permute.xlu0 %393
        %v396 = vlaneseq
        %v397 = vshrl.u32 %v396, 7
        %v398 = vsub.s32 0, %v397
        %v399 = vrot.slane %v394, %v398
        %v400 = vadd.f32 %v389, %v399
        %401 = vst [vmem:[%s162] sm:$0x1] %v400
        %s402 = sand.u32 %s95, 1
        %s403 = scalar_lea.sflag [#allocation4], %s402
        %s404 = sand.u32 %s95, 1
        %s405 = scalar_lea.vmem [#allocation3], %s404
        // Predicated region
        $region33: #{tpu_custom_call.1} parent=31 // pred_check
          %p406 = pneg %p105
        $region34: #{tpu_custom_call.1} parent=31 // pred_check_branch
          %408 = sbr.rel (%p406) target = $region36
        $region35: #{tpu_custom_call.1} parent=31 // pred_region
          %s410 = ssub.s32 16, 16
          %411 = vsyncadd %s403, %s410
          %s412 = smul.addr %s19, 16
          %s413 = scalar_lea.hbm %s3, %s412
          %s415 = sshll.u32 %s405, 4
          %s416 = int_to_ptr.vmem [resolvable:$true] %s415
          %418 = dma.vmem_to_hbm [thread:$0]  %s416, 16, %s413, %s403
        $region36: #{tpu_custom_call.1} parent=31 // pred_fallthru
          _
      $region32: #{tpu_custom_call.1} parent=5 // pred_fallthru
        _
      %p419 = scmp.le.s32.totalorder 2, %s14
      // Predicated region
      $region37: #{tpu_custom_call.1} parent=5 // pred_check
        %p420 = pneg %p419
      $region38: #{tpu_custom_call.1} parent=5 // pred_check_branch
        %422 = sbr.rel (%p420) target = $region40
      $region39: #{tpu_custom_call.1} parent=5 // pred_region
        %s423 = ssub.s32 %s14, 2
        // Predicated region
        $region41: #{tpu_custom_call.1} parent=39 // pred_check
          %p424 = pneg %p111
        $region42: #{tpu_custom_call.1} parent=39 // pred_check_branch
          %426 = sbr.rel (%p424) target = $region44
        $region43: #{tpu_custom_call.1} parent=39 // pred_region
          %s427 = sand.u32 %s96, 1
          %s428 = scalar_lea.sflag [#allocation4], %s427
          %s429 = sand.u32 %s96, 1
          %s430 = scalar_lea.vmem [#allocation3], %s429
          %431 = dma.done %s428, 16
        $region44: #{tpu_custom_call.1} parent=39 // pred_fallthru
          _
      $region40: #{tpu_custom_call.1} parent=5 // pred_fallthru
        _
    $region6: #{tpu_custom_call.1} parent=1 // loop_footer
      %s18 = sadd.s32 1, %s14
    $region7: #{tpu_custom_call.1} parent=1 // loop_footer_branch
      %13 = sbr.rel target = $region3
    $region8: #{tpu_custom_call.1} parent=1 // loop_exit
      _
    %432 = vsyncpa [#allocation4], 1
    %s433 = scalar_lea.sflag [#allocation4], 1
    %434 = vsyncpa %s433, 1

</llo_original>
